<compile_context>
chip_gen: v7x
topology: tpu7x:2x2x1
jax: 0.10.0
libtpu: 0.0.40
codegen_flags: <defaults>
</compile_context>

<pallas_src>
import functools

import jax
import jax.numpy as jnp
from jax import lax
from jax.experimental import pallas as pl
from jax.experimental.pallas import tpu as pltpu

_MiB = 1 << 20
# Safe working-set target across generations (v7x has 64 MiB physical per TC).
_VMEM_BUDGET = 40 * _MiB


def _round_up(x, m):
    return ((x + m - 1) // m) * m


# ---------------------------------------------------------------------------
# Table preparation (do ONCE per parameter update, not per lookup).
# ---------------------------------------------------------------------------
def pack_double_embedding_table(w_trainable, w_frozen, *, vocab_align=512):
    """Concatenate the trainable+frozen tables into one padded [Vp, Dp] table.

    This reads/writes the full table in HBM, so it must be cached / done once
    outside the per-call lookup path.
    """
    out_dtype = w_trainable.dtype
    n_trainable, D = w_trainable.shape
    n_frozen = w_frozen.shape[0]
    V = n_trainable + n_frozen

    Dp = _round_up(D, 128)                               # lane-dense output
    align = min(vocab_align, _round_up(V, 128))          # don't over-pad tiny vocabs
    Vp = _round_up(V, align)

    w_all = jnp.concatenate(
        [w_trainable.astype(out_dtype), w_frozen.astype(out_dtype)], axis=0)
    w_pad = jnp.zeros((Vp, Dp), dtype=out_dtype).at[:V, :D].set(w_all)
    return w_pad, D


# ---------------------------------------------------------------------------
# Path 1: table fully VMEM-resident (constant index_map -> fetched once).
# ---------------------------------------------------------------------------
def _resident_kernel(idx_ref, tbl_ref, out_ref, acc_ref, *, vocab_chunk, precision):
    # idx_ref: (T, 1)  int32 token ids
    # tbl_ref: (Vp, Dp) resident padded table
    # out_ref: (T, Dp)
    # acc_ref: (T, Dp) f32 scratch
    T = idx_ref.shape[0]
    Vp = tbl_ref.shape[0]
    n_chunks = Vp // vocab_chunk

    acc_ref[...] = jnp.zeros_like(acc_ref)
    ids = idx_ref[...]                                          # (T, 1)

    def body(c, carry):
        start = pl.multiple_of(c * vocab_chunk, vocab_chunk)
        local = ids - c * vocab_chunk
        iota = lax.broadcasted_iota(jnp.int32, (T, vocab_chunk), 1)
        onehot = (iota == local).astype(tbl_ref.dtype)          # exact 0/1
        acc_ref[...] += jnp.dot(
            onehot, tbl_ref[pl.ds(start, vocab_chunk), :],
            preferred_element_type=jnp.float32, precision=precision)
        return carry

    lax.fori_loop(0, n_chunks, body, 0)
    out_ref[...] = acc_ref[...].astype(out_ref.dtype)


# ---------------------------------------------------------------------------
# Path 2: per-row DMA gather via scalar-prefetched ids (huge vocab).
# ---------------------------------------------------------------------------
def _gather_kernel(ids_ref, tbl_ref, out_ref):
    # tbl_ref / out_ref: (1, 1, Dp) -- the gathered table row.
    del ids_ref
    out_ref[...] = tbl_ref[...]


# ---------------------------------------------------------------------------
# Path 3: streaming fallback (vocab tiled on a reduction-last grid axis).
# ---------------------------------------------------------------------------
def _streaming_kernel(idx_ref, tbl_ref, out_ref, acc_ref, *, precision):
    k = pl.program_id(1)
    tk = tbl_ref.shape[0]
    T = idx_ref.shape[0]

    @pl.when(k == 0)
    def _():
        acc_ref[...] = jnp.zeros_like(acc_ref)

    local = idx_ref[...] - k * tk
    iota = lax.broadcasted_iota(jnp.int32, (T, tk), 1)
    onehot = (iota == local).astype(tbl_ref.dtype)
    acc_ref[...] += jnp.dot(onehot, tbl_ref[...],
                            preferred_element_type=jnp.float32,
                            precision=precision)

    @pl.when(k == pl.num_programs(1) - 1)
    def _():
        out_ref[...] = acc_ref[...].astype(out_ref.dtype)


# ---------------------------------------------------------------------------
# Lookup wrapper (per-call path: padded table is an input, never rebuilt here).
# ---------------------------------------------------------------------------
def double_embedding_lookup(idx, w_pad, d_model, *, token_tile=512, vocab_tile=512):
    """idx: [B, L] int -> [B, L, d_model] in the packed table's dtype."""
    B, L = idx.shape
    Vp, Dp = w_pad.shape
    out_dtype = w_pad.dtype
    bt = jnp.dtype(out_dtype).itemsize
    D = d_model
    N = B * L

    # f32 tables: force exact MXU passes so the "gathered" row is bit-faithful.
    precision = (jax.lax.Precision.HIGHEST
                 if jnp.dtype(out_dtype) == jnp.dtype(jnp.float32) else None)

    token_tile = max(8, min(token_tile, _round_up(N, 8)))
    # pack_double_embedding_table pads Vp so this divides for the default args.
    vocab_chunk = vocab_tile if Vp % vocab_tile == 0 else Vp

    def budget(tt, resident):
        tbl = (2 * Vp * Dp * bt) if resident else (2 * vocab_chunk * Dp * bt)
        io = 2 * tt * 128 * 4 + 2 * tt * Dp * bt + tt * Dp * 4   # idx + out + acc
        work = 3 * tt * vocab_chunk * 4                           # iota/one-hot temps
        return tbl + io + work

    def limit(total):
        return int(min(max(total + 16 * _MiB, 32 * _MiB), 64 * _MiB))

    # --- choose path (static, from shapes only) ---
    tt_res = token_tile
    while budget(tt_res, resident=True) > _VMEM_BUDGET and tt_res > 64:
        tt_res = max(64, _round_up(tt_res // 2, 8))
    use_resident = budget(tt_res, resident=True) <= _VMEM_BUDGET
    use_gather = (not use_resident) and (Vp > 16 * token_tile)

    if use_resident:
        token_tile = tt_res
    elif not use_gather:
        # v7x-safe streaming budget (64 MiB per-TC physical VMEM).
        while budget(token_tile, resident=False) > _VMEM_BUDGET and token_tile > 64:
            token_tile = max(64, _round_up(token_tile // 2, 8))

    if use_gather:
        # One table row DMA'd per token: N*Dp bytes instead of re-streaming the
        # table once per token tile.  Reshape so the gathered row lives on the
        # leading (block-indexed) axis and the last two dims stay full-extent.
        ids_1d = idx.reshape(N).astype(jnp.int32)
        tbl_3d = w_pad.reshape(Vp, 1, Dp)
        out3 = pl.pallas_call(
            _gather_kernel,
            out_shape=jax.ShapeDtypeStruct((N, 1, Dp), out_dtype),
            grid_spec=pltpu.PrefetchScalarGridSpec(
                num_scalar_prefetch=1,
                grid=(N,),
                in_specs=[pl.BlockSpec((1, 1, Dp), lambda i, ids: (ids[i], 0, 0))],
                out_specs=pl.BlockSpec((1, 1, Dp), lambda i, ids: (i, 0, 0)),
            ),
            compiler_params=pltpu.CompilerParams(
                dimension_semantics=("arbitrary",),
            ),
        )(ids_1d, tbl_3d)
        return out3.reshape(N, Dp)[:, :D].reshape(B, L, D)

    Np = _round_up(N, token_tile)
    idx_flat = jnp.zeros((Np, 1), dtype=jnp.int32).at[:N, 0].set(
        idx.reshape(N).astype(jnp.int32))

    if use_resident:
        grid = (Np // token_tile,)
        out_pad = pl.pallas_call(
            functools.partial(_resident_kernel,
                              vocab_chunk=min(vocab_chunk, Vp),
                              precision=precision),
            out_shape=jax.ShapeDtypeStruct((Np, Dp), out_dtype),
            grid_spec=pltpu.PrefetchScalarGridSpec(
                num_scalar_prefetch=0,
                grid=grid,
                in_specs=[
                    pl.BlockSpec((token_tile, 1), lambda i: (i, 0)),
                    # Constant block index -> the full table is DMA'd once and
                    # stays VMEM-resident across all token tiles.
                    pl.BlockSpec((Vp, Dp), lambda i: (0, 0)),
                ],
                out_specs=pl.BlockSpec((token_tile, Dp), lambda i: (i, 0)),
                scratch_shapes=[pltpu.VMEM((token_tile, Dp), jnp.float32)],
            ),
            compiler_params=pltpu.CompilerParams(
                dimension_semantics=("parallel",),
                vmem_limit_bytes=limit(budget(token_tile, resident=True)),
            ),
        )(idx_flat, w_pad)
    else:
        grid = (Np // token_tile, Vp // vocab_chunk)
        out_pad = pl.pallas_call(
            functools.partial(_streaming_kernel, precision=precision),
            out_shape=jax.ShapeDtypeStruct((Np, Dp), out_dtype),
            grid_spec=pltpu.PrefetchScalarGridSpec(
                num_scalar_prefetch=0,
                grid=grid,
                in_specs=[
                    pl.BlockSpec((token_tile, 1), lambda i, k: (i, 0)),
                    pl.BlockSpec((vocab_chunk, Dp), lambda i, k: (k, 0)),
                ],
                out_specs=pl.BlockSpec((token_tile, Dp), lambda i, k: (i, 0)),
                scratch_shapes=[pltpu.VMEM((token_tile, Dp), jnp.float32)],
            ),
            compiler_params=pltpu.CompilerParams(
                dimension_semantics=("parallel", "arbitrary"),
                vmem_limit_bytes=limit(budget(token_tile, resident=False)),
            ),
        )(idx_flat, w_pad)

    return out_pad[:N, :D].reshape(B, L, D)


def double_embedding(idx, w_trainable, w_frozen, **kw):
    """Convenience wrapper.  In a real model, call pack_double_embedding_table
    once (cache the result) and use double_embedding_lookup per forward pass."""
    w_pad, D = pack_double_embedding_table(w_trainable, w_frozen)
    return double_embedding_lookup(idx, w_pad, D, **kw)


def init_double_embedding(key, n_trainable, n_frozen, embedding_dim, padding_idx=None):
    """Deterministic init mirroring nn.Embedding (N(0,1), padding row zeroed).

    TODO(synk): nn.Embedding's padding_idx also zeroes gradients and the frozen
    table has requires_grad=False; forward-only here, a custom VJP would be
    needed to replicate that training behavior.
    """
    k1, k2 = jax.random.split(key)
    w_trainable = jax.random.normal(k1, (n_trainable, embedding_dim), dtype=jnp.float32)
    w_frozen = jax.random.normal(k2, (n_frozen, embedding_dim), dtype=jnp.float32)
    if padding_idx is not None:
        if padding_idx < n_trainable:
            w_trainable = w_trainable.at[padding_idx].set(0.0)
        else:
            w_frozen = w_frozen.at[padding_idx - n_trainable].set(0.0)
    return w_trainable, w_frozen


if __name__ == "__main__":
    key = jax.random.PRNGKey(0)

    B, L = 2, 8
    n_trainable, n_frozen, D = 8, 12, 32
    padding_idx = 0

    w_trainable, w_frozen = init_double_embedding(
        key, n_trainable, n_frozen, D, padding_idx=padding_idx
    )

    # Deterministic token ids covering both the trainable and frozen ranges.
    idx_key = jax.random.fold_in(key, 123)
    idx = jax.random.randint(idx_key, (B, L), 0, n_trainable + n_frozen, dtype=jnp.int32)

    # Pack once (cached in a real model), then look up.
    w_pad, d_model = pack_double_embedding_table(w_trainable, w_frozen)
    out = double_embedding_lookup(idx, w_pad, d_model)
    out = jax.block_until_ready(out)

    # Pure-JAX reference of the PyTorch forward.
    w_all = jnp.concatenate([w_trainable, w_frozen], axis=0)
    ref = w_all[idx]

    assert out.shape == (B, L, D)
    assert out.dtype == w_trainable.dtype
    assert jnp.allclose(out, ref, atol=1e-5, rtol=1e-5)

    print("KERNEL_OK")
</pallas_src>

<mosaic_0001>
module attributes {stable_mosaic.version = 11 : i64} {
  func.func @_resident_kernel(%arg0: i32, %arg1: memref<16x1xi32, #tpu.memory_space<vmem>>, %arg2: memref<128x128xf32, #tpu.memory_space<vmem>>, %arg3: memref<16x128xf32, #tpu.memory_space<vmem>>, %arg4: memref<16x128xf32, #tpu.memory_space<vmem>>) attributes {dimension_semantics = [#tpu.dimension_semantics<parallel>], iteration_bounds = array<i64: 1>, scalar_prefetch = 0 : i64, scratch_operands = 1 : i64, tpu.core_type = #tpu.core_type<tc>, window_params = [{transform_indices = @transform_0, window_bounds = array<i64: 16, 1>}, {pipeline_mode = #tpu.pipeline_mode<synchronous>, transform_indices = @transform_1, window_bounds = array<i64: 128, 128>}, {transform_indices = @transform_2, window_bounds = array<i64: 16, 128>}]} {
    %cst = arith.constant 0.000000e+00 : f32
    %0 = vector.broadcast %cst : f32 to vector<16x128xf32>
    %c0 = arith.constant 0 : index
    %c0_0 = arith.constant 0 : index
    %1 = vector.load %arg4[%c0, %c0_0] : memref<16x128xf32, #tpu.memory_space<vmem>>, vector<16x128xf32>
    tpu.vector_store %arg4[%c0, %c0_0], %0 {strides = array<i32>} : memref<16x128xf32, #tpu.memory_space<vmem>>, vector<16x128xf32>,
    %c0_1 = arith.constant 0 : index
    %c0_2 = arith.constant 0 : index
    %2 = vector.load %arg1[%c0_1, %c0_2] : memref<16x1xi32, #tpu.memory_space<vmem>>, vector<16x1xi32>
    %c0_i32 = arith.constant 0 : i32
    %c128_i32 = arith.constant 128 : i32
    %3 = arith.muli %c0_i32, %c128_i32 : i32
    %4 = tpu.assume_multiple %3, 128 : i32
    %c128_i32_3 = arith.constant 128 : i32
    %5 = arith.muli %c0_i32, %c128_i32_3 : i32
    %6 = vector.broadcast %5 : i32 to vector<16x1xi32>
    %7 = arith.subi %2, %6 : vector<16x1xi32>
    %8 = tpu.iota {dimensions = array<i32: 1>} : vector<16x128xi32>
    %9 = vector.broadcast %7 : vector<16x1xi32> to vector<16x128xi32>
    %10 = arith.cmpi eq, %8, %9 : vector<16x128xi32>
    %11 = arith.extui %10 : vector<16x128xi1> to vector<16x128xi32>
    %12 = arith.sitofp %11 : vector<16x128xi32> to vector<16x128xf32>
    %c0_4 = arith.constant 0 : index
    %c0_5 = arith.constant 0 : index
    %13 = vector.load %arg4[%c0_4, %c0_5] : memref<16x128xf32, #tpu.memory_space<vmem>>, vector<16x128xf32>
    %14 = arith.index_cast %4 : i32 to index
    %c0_6 = arith.constant 0 : index
    %15 = vector.load %arg2[%14, %c0_6] : memref<128x128xf32, #tpu.memory_space<vmem>>, vector<128x128xf32>
    %cst_7 = arith.constant dense<0.000000e+00> : vector<16x128xf32>
    %16 = tpu.matmul %12, %15, %cst_7 {dimension_numbers = #tpu.dot_dimension_numbers<[1], [0], [0], [1], [0, 0, 1, 1], [], []>, precision = #tpu.contract_precision<fp32>} : vector<16x128xf32>, vector<128x128xf32>, vector<16x128xf32> -> vector<16x128xf32>
    %17 = arith.addf %13, %16 : vector<16x128xf32>
    %c0_8 = arith.constant 0 : index
    %c0_9 = arith.constant 0 : index
    %18 = vector.load %arg4[%c0_8, %c0_9] : memref<16x128xf32, #tpu.memory_space<vmem>>, vector<16x128xf32>
    tpu.vector_store %arg4[%c0_8, %c0_9], %17 {strides = array<i32>} : memref<16x128xf32, #tpu.memory_space<vmem>>, vector<16x128xf32>,
    %c1_i32 = arith.constant 1 : i32
    %c0_10 = arith.constant 0 : index
    %c0_11 = arith.constant 0 : index
    %19 = vector.load %arg4[%c0_10, %c0_11] : memref<16x128xf32, #tpu.memory_space<vmem>>, vector<16x128xf32>
    %c0_12 = arith.constant 0 : index
    %c0_13 = arith.constant 0 : index
    %20 = vector.load %arg3[%c0_12, %c0_13] : memref<16x128xf32, #tpu.memory_space<vmem>>, vector<16x128xf32>
    tpu.vector_store %arg3[%c0_12, %c0_13], %19 {strides = array<i32>} : memref<16x128xf32, #tpu.memory_space<vmem>>, vector<16x128xf32>,
    return
  }
  func.func @transform_0(%arg0: i32) -> (i32, i32) {
    %c0_i32 = arith.constant 0 : i32
    %c0_i32_0 = arith.constant 0 : i32
    return %arg0, %c0_i32 : i32, i32
  }
  func.func @transform_1(%arg0: i32) -> (i32, i32) {
    %c0_i32 = arith.constant 0 : i32
    %c0_i32_0 = arith.constant 0 : i32
    %c0_i32_1 = arith.constant 0 : i32
    return %c0_i32, %c0_i32_0 : i32, i32
  }
  func.func @transform_2(%arg0: i32) -> (i32, i32) {
    %c0_i32 = arith.constant 0 : i32
    %c0_i32_0 = arith.constant 0 : i32
    return %arg0, %c0_i32 : i32, i32
  }
}

</mosaic_0001>

<llo_original>
// kernel: tpu_custom_call.1
$region0: #{tpu_custom_call.1}
  #allocation0 [shape = 'u32[]', space=smem, size = 0x4, offset = 0x4, fixed_abs, tag = 'smem constant byte address 0x4 - core index']
  #allocation1 [shape = 'u32[144,128]{1,0:T(1,128)}', space=vmem, size = 0x12000, scoped, tag = 'internal scratch']
  #allocation2 [shape = 'f32[16,128]{1,0:T(8,128)}', space=vmem, size = 0x2000, scoped, tag = 'scratch operand']
  %s0 = inlined_call_operand.vmem [shape: s32[16,1], index: 0, kind: input, shape index: {}]
  %s1 = inlined_call_operand.hbm [shape: f32[128,128], index: 1, kind: input, shape index: {}]
  %s2 = inlined_call_operand.hbm [shape: f32[16,128], index: 2, kind: output, shape index: {}]
  %s3 = sld [smem:[#allocation0]]
  $region22: #{tpu_custom_call.1} parent=0
    _
  %s5 = ssub.s32 1, %s3
  %s6 = scalar_select 0, %s5, %s3
  $region1: #{tpu_custom_call.1} parent=0
    #allocation3 [shape = 'u8[65536]{0}', space=vmem, size = 0x10000, scoped, tag = 'input window, operand 1, single buffered']
    #allocation4 [shape = 's32[1]{0}', space=sflag, size = 0x4, scoped, tag = 'scoped memory for tpu_custom_call.1']
    #allocation5 [shape = 's32[1]{0}', space=sflag, size = 0x4, scoped, tag = 'scoped memory for tpu_custom_call.1']
    #allocation6 [shape = 'u8[8192]{0}', space=vmem, size = 0x2000, scoped, tag = 'output window, operand 0, single buffered']
    %7 = vsyncpa [#allocation4], 0
    %8 = vsyncpa [#allocation5], 0
    // Predicated region
    $region2: #{tpu_custom_call.1} parent=1 // pred_check
      _
    $region3: #{tpu_custom_call.1} parent=1 // pred_check_branch
      %10 = sbr.rel (0) target = $region5
    $region4: #{tpu_custom_call.1} parent=1 // pred_region
      _
    $region5: #{tpu_custom_call.1} parent=1 // pred_fallthru
      _
    // Predicated region
    $region6: #{tpu_custom_call.1} parent=1 // pred_check
      _
    $region7: #{tpu_custom_call.1} parent=1 // pred_check_branch
      %12 = sbr.rel (0) target = $region9
    $region8: #{tpu_custom_call.1} parent=1 // pred_region
      %s14 = ssub.s32 2048, 2048
      %15 = vsyncadd [#allocation4], %s14
      %s16 = sshll.u32 [#allocation3], 4
      %s17 = int_to_ptr.vmem [resolvable:$true] %s16
      %22 = dma.hbm_to_vmem [thread:$0]  %s1, 2048, %s17, [#allocation4], 128, 128, 8
    $region9: #{tpu_custom_call.1} parent=1 // pred_fallthru
      _
    // Predicated region
    $region10: #{tpu_custom_call.1} parent=1 // pred_check
      _
    $region11: #{tpu_custom_call.1} parent=1 // pred_check_branch
      %24 = sbr.rel (0) target = $region13
    $region12: #{tpu_custom_call.1} parent=1 // pred_region
      %25 = dma.done [#allocation4], 2048
    $region13: #{tpu_custom_call.1} parent=1 // pred_fallthru
      _
    %26 = vst [vmem:[#allocation2] sm:$0xff] 0.0
    %27 = vst [vmem:[#allocation2 + $0x8] sm:$0xff] 0.0
    %v28 = vld [vmem:[%s0] sm:$0xff]
    %v29 = vld [vmem:[%s0 + $0x8] sm:$0xff]
    %v30 = vlaneseq
    %v31 = vand.u32 %v30, 127
    %32 = vset.pattern.permute.xlu0 0
    %33 = vperm.xlu0 %32, %v28
    %v34 = vpop.permute.xlu0 %33
    %35 = vset.pattern.permute.xlu0 0
    %36 = vperm.xlu0 %35, %v29
    %v37 = vpop.permute.xlu0 %36
    %vm38 = vcmp.eq.s32.totalorder %v31, %v34
    %vm39 = vcmp.eq.s32.totalorder %v31, %v37
    %v40 = vsel %vm38, 1, 0
    %v41 = vsel %vm39, 1, 0
    %v42 = vcvt.s32.f32 %v40
    %v43 = vcvt.s32.f32 %v41
    %v44 = vld [vmem:[#allocation2] sm:$0xff]
    %v45 = vld [vmem:[#allocation2 + $0x8] sm:$0xff]
    %v46 = vld [vmem:[#allocation3] sm:$0xff]
    %v47 = vld [vmem:[#allocation3 + $0x8] sm:$0xff]
    %v48 = vld [vmem:[#allocation3 + $0x10] sm:$0xff]
    %v49 = vld [vmem:[#allocation3 + $0x18] sm:$0xff]
    %v50 = vld [vmem:[#allocation3 + $0x20] sm:$0xff]
    %v51 = vld [vmem:[#allocation3 + $0x28] sm:$0xff]
    %v52 = vld [vmem:[#allocation3 + $0x30] sm:$0xff]
    %v53 = vld [vmem:[#allocation3 + $0x38] sm:$0xff]
    %v54 = vld [vmem:[#allocation3 + $0x40] sm:$0xff]
    %v55 = vld [vmem:[#allocation3 + $0x48] sm:$0xff]
    %v56 = vld [vmem:[#allocation3 + $0x50] sm:$0xff]
    %v57 = vld [vmem:[#allocation3 + $0x58] sm:$0xff]
    %v58 = vld [vmem:[#allocation3 + $0x60] sm:$0xff]
    %v59 = vld [vmem:[#allocation3 + $0x68] sm:$0xff]
    %v60 = vld [vmem:[#allocation3 + $0x70] sm:$0xff]
    %v61 = vld [vmem:[#allocation3 + $0x78] sm:$0xff]
    %62 = vmatprep.subr.mxu0 0.0
    %v63 = vand.u32 %v46, 4294901760
    %64 = vmatpush1.msra.mxu0 %v63
    %65 = vmatprep.subr.mxu0 0.0
    %v66 = vand.u32 %v47, 4294901760
    %67 = vmatpush1.msra.mxu0 %v66
    %68 = vmatprep.subr.mxu0 0.0
    %v69 = vand.u32 %v48, 4294901760
    %70 = vmatpush1.msra.mxu0 %v69
    %71 = vmatprep.subr.mxu0 0.0
    %v72 = vand.u32 %v49, 4294901760
    %73 = vmatpush1.msra.mxu0 %v72
    %74 = vmatprep.subr.mxu0 0.0
    %v75 = vand.u32 %v50, 4294901760
    %76 = vmatpush1.msra.mxu0 %v75
    %77 = vmatprep.subr.mxu0 0.0
    %v78 = vand.u32 %v51, 4294901760
    %79 = vmatpush1.msra.mxu0 %v78
    %80 = vmatprep.subr.mxu0 0.0
    %v81 = vand.u32 %v52, 4294901760
    %82 = vmatpush1.msra.mxu0 %v81
    %83 = vmatprep.subr.mxu0 0.0
    %v84 = vand.u32 %v53, 4294901760
    %85 = vmatpush1.msra.mxu0 %v84
    %86 = vmatprep.subr.mxu0 0.0
    %v87 = vand.u32 %v54, 4294901760
    %88 = vmatpush1.msra.mxu0 %v87
    %89 = vmatprep.subr.mxu0 0.0
    %v90 = vand.u32 %v55, 4294901760
    %91 = vmatpush1.msra.mxu0 %v90
    %92 = vmatprep.subr.mxu0 0.0
    %v93 = vand.u32 %v56, 4294901760
    %94 = vmatpush1.msra.mxu0 %v93
    %95 = vmatprep.subr.mxu0 0.0
    %v96 = vand.u32 %v57, 4294901760
    %97 = vmatpush1.msra.mxu0 %v96
    %98 = vmatprep.subr.mxu0 0.0
    %v99 = vand.u32 %v58, 4294901760
    %100 = vmatpush1.msra.mxu0 %v99
    %101 = vmatprep.subr.mxu0 0.0
    %v102 = vand.u32 %v59, 4294901760
    %103 = vmatpush1.msra.mxu0 %v102
    %104 = vmatprep.subr.mxu0 0.0
    %v105 = vand.u32 %v60, 4294901760
    %106 = vmatpush1.msra.mxu0 %v105
    %107 = vmatprep.subr.mxu0 0.0
    %v108 = vand.u32 %v61, 4294901760
    %109 = vmatpush1.msra.mxu0 %v108
    %110 = vmatprep.subr.mxu0 0.0
    %111 = vmatpush1.msra.mxu0 0.0
    %112 = vmatprep.subr.mxu0 0.0
    %113 = vmatpush1.msra.mxu0 0.0
    %114 = vmatprep.subr.mxu0 0.0
    %115 = vmatpush1.msra.mxu0 0.0
    %116 = vmatprep.subr.mxu0 0.0
    %117 = vmatpush1.msra.mxu0 0.0
    %118 = vmatprep.subr.mxu0 0.0
    %119 = vmatpush1.msra.mxu0 0.0
    %120 = vmatprep.subr.mxu0 0.0
    %121 = vmatpush1.msra.mxu0 0.0
    %122 = vmatprep.subr.mxu0 0.0
    %123 = vmatpush1.msra.mxu0 0.0
    %124 = vmatprep.subr.mxu0 0.0
    %125 = vmatpush1.msra.mxu0 0.0
    %126 = vmatprep.subr.mxu0 0.0
    %127 = vmatpush1.msra.mxu0 0.0
    %128 = vmatprep.subr.mxu0 0.0
    %129 = vmatpush1.msra.mxu0 0.0
    %130 = vmatprep.subr.mxu0 0.0
    %131 = vmatpush1.msra.mxu0 0.0
    %132 = vmatprep.subr.mxu0 0.0
    %133 = vmatpush1.msra.mxu0 0.0
    %134 = vmatprep.subr.mxu0 0.0
    %135 = vmatpush1.msra.mxu0 0.0
    %136 = vmatprep.subr.mxu0 0.0
    %137 = vmatpush1.msra.mxu0 0.0
    %138 = vmatprep.subr.mxu0 0.0
    %139 = vmatpush1.msra.mxu0 0.0
    %140 = vmatprep.subr.mxu0 0.0
    %141 = vmatpush1.msra.mxu0 0.0
    %142 = vmatprep.mubr.f32.mxu0 0.0
    %v143 = vand.u32 %v42, 4294901760
    %v144 = vsub.f32 %v42, %v143
    %v145 = vand.u32 %v144, 4294901760
    %v146 = vsub.f32 %v144, %v145
    %v147 = vand.u32 %v146, 4294901760
    %148 = vmatmul.mubr.f32.gmra.mrb[0].mxu0 %v147
    %v149 = vpop.f32.mrb[0].mxu0
    %v150 = vadd.f32 0.0, %v149
    %v151 = vpop.f32.mrb[0].mxu0
    %152 = vmatprep.mubr.f32.mxu0 0.0
    %v153 = vand.u32 %v43, 4294901760
    %v154 = vsub.f32 %v43, %v153
    %v155 = vand.u32 %v154, 4294901760
    %v156 = vsub.f32 %v154, %v155
    %v157 = vand.u32 %v156, 4294901760
    %158 = vmatmul.mubr.f32.gmra.mrb[0].mxu0 %v157
    %v159 = vpop.f32.mrb[0].mxu0
    %v160 = vadd.f32 0.0, %v159
    %v161 = vpop.f32.mrb[0].mxu0
    %162 = vdwg.mxu0
    %163 = vmatprep.subr.mxu0 0.0
    %v164 = vand.u32 %v46, 4294901760
    %v165 = vsub.f32 %v46, %v164
    %v166 = vand.u32 %v165, 4294901760
    %v167 = vsub.f32 %v165, %v166
    %v168 = vand.u32 %v167, 4294901760
    %169 = vmatpush1.msra.mxu0 %v168
    %170 = vmatprep.subr.mxu0 0.0
    %v171 = vand.u32 %v47, 4294901760
    %v172 = vsub.f32 %v47, %v171
    %v173 = vand.u32 %v172, 4294901760
    %v174 = vsub.f32 %v172, %v173
    %v175 = vand.u32 %v174, 4294901760
    %176 = vmatpush1.msra.mxu0 %v175
    %177 = vmatprep.subr.mxu0 0.0
    %v178 = vand.u32 %v48, 4294901760
    %v179 = vsub.f32 %v48, %v178
    %v180 = vand.u32 %v179, 4294901760
    %v181 = vsub.f32 %v179, %v180
    %v182 = vand.u32 %v181, 4294901760
    %183 = vmatpush1.msra.mxu0 %v182
    %184 = vmatprep.subr.mxu0 0.0
    %v185 = vand.u32 %v49, 4294901760
    %v186 = vsub.f32 %v49, %v185
    %v187 = vand.u32 %v186, 4294901760
    %v188 = vsub.f32 %v186, %v187
    %v189 = vand.u32 %v188, 4294901760
    %190 = vmatpush1.msra.mxu0 %v189
    %191 = vmatprep.subr.mxu0 0.0
    %v192 = vand.u32 %v50, 4294901760
    %v193 = vsub.f32 %v50, %v192
    %v194 = vand.u32 %v193, 4294901760
    %v195 = vsub.f32 %v193, %v194
    %v196 = vand.u32 %v195, 4294901760
    %197 = vmatpush1.msra.mxu0 %v196
    %198 = vmatprep.subr.mxu0 0.0
    %v199 = vand.u32 %v51, 4294901760
    %v200 = vsub.f32 %v51, %v199
    %v201 = vand.u32 %v200, 4294901760
    %v202 = vsub.f32 %v200, %v201
    %v203 = vand.u32 %v202, 4294901760
    %204 = vmatpush1.msra.mxu0 %v203
    %205 = vmatprep.subr.mxu0 0.0
    %v206 = vand.u32 %v52, 4294901760
    %v207 = vsub.f32 %v52, %v206
    %v208 = vand.u32 %v207, 4294901760
    %v209 = vsub.f32 %v207, %v208
    %v210 = vand.u32 %v209, 4294901760
    %211 = vmatpush1.msra.mxu0 %v210
    %212 = vmatprep.subr.mxu0 0.0
    %v213 = vand.u32 %v53, 4294901760
    %v214 = vsub.f32 %v53, %v213
    %v215 = vand.u32 %v214, 4294901760
    %v216 = vsub.f32 %v214, %v215
    %v217 = vand.u32 %v216, 4294901760
    %218 = vmatpush1.msra.mxu0 %v217
    %219 = vmatprep.subr.mxu0 0.0
    %v220 = vand.u32 %v54, 4294901760
    %v221 = vsub.f32 %v54, %v220
    %v222 = vand.u32 %v221, 4294901760
    %v223 = vsub.f32 %v221, %v222
    %v224 = vand.u32 %v223, 4294901760
    %225 = vmatpush1.msra.mxu0 %v224
    %226 = vmatprep.subr.mxu0 0.0
    %v227 = vand.u32 %v55, 4294901760
    %v228 = vsub.f32 %v55, %v227
    %v229 = vand.u32 %v228, 4294901760
    %v230 = vsub.f32 %v228, %v229
    %v231 = vand.u32 %v230, 4294901760
    %232 = vmatpush1.msra.mxu0 %v231
    %233 = vmatprep.subr.mxu0 0.0
    %v234 = vand.u32 %v56, 4294901760
    %v235 = vsub.f32 %v56, %v234
    %v236 = vand.u32 %v235, 4294901760
    %v237 = vsub.f32 %v235, %v236
    %v238 = vand.u32 %v237, 4294901760
    %239 = vmatpush1.msra.mxu0 %v238
    %240 = vmatprep.subr.mxu0 0.0
    %v241 = vand.u32 %v57, 4294901760
    %v242 = vsub.f32 %v57, %v241
    %v243 = vand.u32 %v242, 4294901760
    %v244 = vsub.f32 %v242, %v243
    %v245 = vand.u32 %v244, 4294901760
    %246 = vmatpush1.msra.mxu0 %v245
    %247 = vmatprep.subr.mxu0 0.0
    %v248 = vand.u32 %v58, 4294901760
    %v249 = vsub.f32 %v58, %v248
    %v250 = vand.u32 %v249, 4294901760
    %v251 = vsub.f32 %v249, %v250
    %v252 = vand.u32 %v251, 4294901760
    %253 = vmatpush1.msra.mxu0 %v252
    %254 = vmatprep.subr.mxu0 0.0
    %v255 = vand.u32 %v59, 4294901760
    %v256 = vsub.f32 %v59, %v255
    %v257 = vand.u32 %v256, 4294901760
    %v258 = vsub.f32 %v256, %v257
    %v259 = vand.u32 %v258, 4294901760
    %260 = vmatpush1.msra.mxu0 %v259
    %261 = vmatprep.subr.mxu0 0.0
    %v262 = vand.u32 %v60, 4294901760
    %v263 = vsub.f32 %v60, %v262
    %v264 = vand.u32 %v263, 4294901760
    %v265 = vsub.f32 %v263, %v264
    %v266 = vand.u32 %v265, 4294901760
    %267 = vmatpush1.msra.mxu0 %v266
    %268 = vmatprep.subr.mxu0 0.0
    %v269 = vand.u32 %v61, 4294901760
    %v270 = vsub.f32 %v61, %v269
    %v271 = vand.u32 %v270, 4294901760
    %v272 = vsub.f32 %v270, %v271
    %v273 = vand.u32 %v272, 4294901760
    %274 = vmatpush1.msra.mxu0 %v273
    %275 = vmatprep.subr.mxu0 0.0
    %276 = vmatpush1.msra.mxu0 0.0
    %277 = vmatprep.subr.mxu0 0.0
    %278 = vmatpush1.msra.mxu0 0.0
    %279 = vmatprep.subr.mxu0 0.0
    %280 = vmatpush1.msra.mxu0 0.0
    %281 = vmatprep.subr.mxu0 0.0
    %282 = vmatpush1.msra.mxu0 0.0
    %283 = vmatprep.subr.mxu0 0.0
    %284 = vmatpush1.msra.mxu0 0.0
    %285 = vmatprep.subr.mxu0 0.0
    %286 = vmatpush1.msra.mxu0 0.0
    %287 = vmatprep.subr.mxu0 0.0
    %288 = vmatpush1.msra.mxu0 0.0
    %289 = vmatprep.subr.mxu0 0.0
    %290 = vmatpush1.msra.mxu0 0.0
    %291 = vmatprep.subr.mxu0 0.0
    %292 = vmatpush1.msra.mxu0 0.0
    %293 = vmatprep.subr.mxu0 0.0
    %294 = vmatpush1.msra.mxu0 0.0
    %295 = vmatprep.subr.mxu0 0.0
    %296 = vmatpush1.msra.mxu0 0.0
    %297 = vmatprep.subr.mxu0 0.0
    %298 = vmatpush1.msra.mxu0 0.0
    %299 = vmatprep.subr.mxu0 0.0
    %300 = vmatpush1.msra.mxu0 0.0
    %301 = vmatprep.subr.mxu0 0.0
    %302 = vmatpush1.msra.mxu0 0.0
    %303 = vmatprep.subr.mxu0 0.0
    %304 = vmatpush1.msra.mxu0 0.0
    %305 = vmatprep.subr.mxu0 0.0
    %306 = vmatpush1.msra.mxu0 0.0
    %307 = vmatprep.mubr.f32.mxu0 0.0
    %v308 = vand.u32 %v42, 4294901760
    %309 = vmatmul.mubr.f32.gmra.mrb[0].mxu0 %v308
    %v310 = vpop.f32.mrb[0].mxu0
    %v311 = vadd.f32 %v150, %v310
    %v312 = vpop.f32.mrb[0].mxu0
    %313 = vmatprep.mubr.f32.mxu0 0.0
    %v314 = vand.u32 %v43, 4294901760
    %315 = vmatmul.mubr.f32.gmra.mrb[0].mxu0 %v314
    %v316 = vpop.f32.mrb[0].mxu0
    %v317 = vadd.f32 %v160, %v316
    %v318 = vpop.f32.mrb[0].mxu0
    %319 = vdwg.mxu0
    %320 = vmatprep.subr.mxu0 0.0
    %v321 = vand.u32 %v46, 4294901760
    %v322 = vsub.f32 %v46, %v321
    %323 = vmatpush1.msra.mxu0 %v322
    %324 = vmatprep.subr.mxu0 0.0
    %v325 = vand.u32 %v47, 4294901760
    %v326 = vsub.f32 %v47, %v325
    %327 = vmatpush1.msra.mxu0 %v326
    %328 = vmatprep.subr.mxu0 0.0
    %v329 = vand.u32 %v48, 4294901760
    %v330 = vsub.f32 %v48, %v329
    %331 = vmatpush1.msra.mxu0 %v330
    %332 = vmatprep.subr.mxu0 0.0
    %v333 = vand.u32 %v49, 4294901760
    %v334 = vsub.f32 %v49, %v333
    %335 = vmatpush1.msra.mxu0 %v334
    %336 = vmatprep.subr.mxu0 0.0
    %v337 = vand.u32 %v50, 4294901760
    %v338 = vsub.f32 %v50, %v337
    %339 = vmatpush1.msra.mxu0 %v338
    %340 = vmatprep.subr.mxu0 0.0
    %v341 = vand.u32 %v51, 4294901760
    %v342 = vsub.f32 %v51, %v341
    %343 = vmatpush1.msra.mxu0 %v342
    %344 = vmatprep.subr.mxu0 0.0
    %v345 = vand.u32 %v52, 4294901760
    %v346 = vsub.f32 %v52, %v345
    %347 = vmatpush1.msra.mxu0 %v346
    %348 = vmatprep.subr.mxu0 0.0
    %v349 = vand.u32 %v53, 4294901760
    %v350 = vsub.f32 %v53, %v349
    %351 = vmatpush1.msra.mxu0 %v350
    %352 = vmatprep.subr.mxu0 0.0
    %v353 = vand.u32 %v54, 4294901760
    %v354 = vsub.f32 %v54, %v353
    %355 = vmatpush1.msra.mxu0 %v354
    %356 = vmatprep.subr.mxu0 0.0
    %v357 = vand.u32 %v55, 4294901760
    %v358 = vsub.f32 %v55, %v357
    %359 = vmatpush1.msra.mxu0 %v358
    %360 = vmatprep.subr.mxu0 0.0
    %v361 = vand.u32 %v56, 4294901760
    %v362 = vsub.f32 %v56, %v361
    %363 = vmatpush1.msra.mxu0 %v362
    %364 = vmatprep.subr.mxu0 0.0
    %v365 = vand.u32 %v57, 4294901760
    %v366 = vsub.f32 %v57, %v365
    %367 = vmatpush1.msra.mxu0 %v366
    %368 = vmatprep.subr.mxu0 0.0
    %v369 = vand.u32 %v58, 4294901760
    %v370 = vsub.f32 %v58, %v369
    %371 = vmatpush1.msra.mxu0 %v370
    %372 = vmatprep.subr.mxu0 0.0
    %v373 = vand.u32 %v59, 4294901760
    %v374 = vsub.f32 %v59, %v373
    %375 = vmatpush1.msra.mxu0 %v374
    %376 = vmatprep.subr.mxu0 0.0
    %v377 = vand.u32 %v60, 4294901760
    %v378 = vsub.f32 %v60, %v377
    %379 = vmatpush1.msra.mxu0 %v378
    %380 = vmatprep.subr.mxu0 0.0
    %v381 = vand.u32 %v61, 4294901760
    %v382 = vsub.f32 %v61, %v381
    %383 = vmatpush1.msra.mxu0 %v382
    %384 = vmatprep.subr.mxu0 0.0
    %385 = vmatpush1.msra.mxu0 0.0
    %386 = vmatprep.subr.mxu0 0.0
    %387 = vmatpush1.msra.mxu0 0.0
    %388 = vmatprep.subr.mxu0 0.0
    %389 = vmatpush1.msra.mxu0 0.0
    %390 = vmatprep.subr.mxu0 0.0
    %391 = vmatpush1.msra.mxu0 0.0
    %392 = vmatprep.subr.mxu0 0.0
    %393 = vmatpush1.msra.mxu0 0.0
    %394 = vmatprep.subr.mxu0 0.0
    %395 = vmatpush1.msra.mxu0 0.0
    %396 = vmatprep.subr.mxu0 0.0
    %397 = vmatpush1.msra.mxu0 0.0
    %398 = vmatprep.subr.mxu0 0.0
    %399 = vmatpush1.msra.mxu0 0.0
    %400 = vmatprep.subr.mxu0 0.0
    %401 = vmatpush1.msra.mxu0 0.0
    %402 = vmatprep.subr.mxu0 0.0
    %403 = vmatpush1.msra.mxu0 0.0
    %404 = vmatprep.subr.mxu0 0.0
    %405 = vmatpush1.msra.mxu0 0.0
    %406 = vmatprep.subr.mxu0 0.0
    %407 = vmatpush1.msra.mxu0 0.0
    %408 = vmatprep.subr.mxu0 0.0
    %409 = vmatpush1.msra.mxu0 0.0
    %410 = vmatprep.subr.mxu0 0.0
    %411 = vmatpush1.msra.mxu0 0.0
    %412 = vmatprep.subr.mxu0 0.0
    %413 = vmatpush1.msra.mxu0 0.0
    %414 = vmatprep.subr.mxu0 0.0
    %415 = vmatpush1.msra.mxu0 0.0
    %416 = vmatprep.mubr.f32.mxu0 0.0
    %v417 = vand.u32 %v42, 4294901760
    %v418 = vsub.f32 %v42, %v417
    %419 = vmatmul.mubr.f32.gmra.mrb[0].mxu0 %v418
    %v420 = vpop.f32.mrb[0].mxu0
    %v421 = vadd.f32 %v311, %v420
    %v422 = vpop.f32.mrb[0].mxu0
    %423 = vmatprep.mubr.f32.mxu0 0.0
    %v424 = vand.u32 %v43, 4294901760
    %v425 = vsub.f32 %v43, %v424
    %426 = vmatmul.mubr.f32.gmra.mrb[0].mxu0 %v425
    %v427 = vpop.f32.mrb[0].mxu0
    %v428 = vadd.f32 %v317, %v427
    %v429 = vpop.f32.mrb[0].mxu0
    %430 = vdwg.mxu0
    %431 = vmatprep.subr.mxu0 0.0
    %v432 = vand.u32 %v46, 4294901760
    %433 = vmatpush1.msra.mxu0 %v432
    %434 = vmatprep.subr.mxu0 0.0
    %v435 = vand.u32 %v47, 4294901760
    %436 = vmatpush1.msra.mxu0 %v435
    %437 = vmatprep.subr.mxu0 0.0
    %v438 = vand.u32 %v48, 4294901760
    %439 = vmatpush1.msra.mxu0 %v438
    %440 = vmatprep.subr.mxu0 0.0
    %v441 = vand.u32 %v49, 4294901760
    %442 = vmatpush1.msra.mxu0 %v441
    %443 = vmatprep.subr.mxu0 0.0
    %v444 = vand.u32 %v50, 4294901760
    %445 = vmatpush1.msra.mxu0 %v444
    %446 = vmatprep.subr.mxu0 0.0
    %v447 = vand.u32 %v51, 4294901760
    %448 = vmatpush1.msra.mxu0 %v447
    %449 = vmatprep.subr.mxu0 0.0
    %v450 = vand.u32 %v52, 4294901760
    %451 = vmatpush1.msra.mxu0 %v450
    %452 = vmatprep.subr.mxu0 0.0
    %v453 = vand.u32 %v53, 4294901760
    %454 = vmatpush1.msra.mxu0 %v453
    %455 = vmatprep.subr.mxu0 0.0
    %v456 = vand.u32 %v54, 4294901760
    %457 = vmatpush1.msra.mxu0 %v456
    %458 = vmatprep.subr.mxu0 0.0
    %v459 = vand.u32 %v55, 4294901760
    %460 = vmatpush1.msra.mxu0 %v459
    %461 = vmatprep.subr.mxu0 0.0
    %v462 = vand.u32 %v56, 4294901760
    %463 = vmatpush1.msra.mxu0 %v462
    %464 = vmatprep.subr.mxu0 0.0
    %v465 = vand.u32 %v57, 4294901760
    %466 = vmatpush1.msra.mxu0 %v465
    %467 = vmatprep.subr.mxu0 0.0
    %v468 = vand.u32 %v58, 4294901760
    %469 = vmatpush1.msra.mxu0 %v468
    %470 = vmatprep.subr.mxu0 0.0
    %v471 = vand.u32 %v59, 4294901760
    %472 = vmatpush1.msra.mxu0 %v471
    %473 = vmatprep.subr.mxu0 0.0
    %v474 = vand.u32 %v60, 4294901760
    %475 = vmatpush1.msra.mxu0 %v474
    %476 = vmatprep.subr.mxu0 0.0
    %v477 = vand.u32 %v61, 4294901760
    %478 = vmatpush1.msra.mxu0 %v477
    %479 = vmatprep.subr.mxu0 0.0
    %480 = vmatpush1.msra.mxu0 0.0
    %481 = vmatprep.subr.mxu0 0.0
    %482 = vmatpush1.msra.mxu0 0.0
    %483 = vmatprep.subr.mxu0 0.0
    %484 = vmatpush1.msra.mxu0 0.0
    %485 = vmatprep.subr.mxu0 0.0
    %486 = vmatpush1.msra.mxu0 0.0
    %487 = vmatprep.subr.mxu0 0.0
    %488 = vmatpush1.msra.mxu0 0.0
    %489 = vmatprep.subr.mxu0 0.0
    %490 = vmatpush1.msra.mxu0 0.0
    %491 = vmatprep.subr.mxu0 0.0
    %492 = vmatpush1.msra.mxu0 0.0
    %493 = vmatprep.subr.mxu0 0.0
    %494 = vmatpush1.msra.mxu0 0.0
    %495 = vmatprep.subr.mxu0 0.0
    %496 = vmatpush1.msra.mxu0 0.0
    %497 = vmatprep.subr.mxu0 0.0
    %498 = vmatpush1.msra.mxu0 0.0
    %499 = vmatprep.subr.mxu0 0.0
    %500 = vmatpush1.msra.mxu0 0.0
    %501 = vmatprep.subr.mxu0 0.0
    %502 = vmatpush1.msra.mxu0 0.0
    %503 = vmatprep.subr.mxu0 0.0
    %504 = vmatpush1.msra.mxu0 0.0
    %505 = vmatprep.subr.mxu0 0.0
    %506 = vmatpush1.msra.mxu0 0.0
    %507 = vmatprep.subr.mxu0 0.0
    %508 = vmatpush1.msra.mxu0 0.0
    %509 = vmatprep.subr.mxu0 0.0
    %510 = vmatpush1.msra.mxu0 0.0
    %511 = vmatprep.mubr.f32.mxu0 0.0
    %v512 = vand.u32 %v42, 4294901760
    %v513 = vsub.f32 %v42, %v512
    %v514 = vand.u32 %v513, 4294901760
    %515 = vmatmul.mubr.f32.gmra.mrb[0].mxu0 %v514
    %v516 = vpop.f32.mrb[0].mxu0
    %v517 = vadd.f32 %v421, %v516
    %v518 = vpop.f32.mrb[0].mxu0
    %519 = vmatprep.mubr.f32.mxu0 0.0
    %v520 = vand.u32 %v43, 4294901760
    %v521 = vsub.f32 %v43, %v520
    %v522 = vand.u32 %v521, 4294901760
    %523 = vmatmul.mubr.f32.gmra.mrb[0].mxu0 %v522
    %v524 = vpop.f32.mrb[0].mxu0
    %v525 = vadd.f32 %v428, %v524
    %v526 = vpop.f32.mrb[0].mxu0
    %527 = vdwg.mxu0
    %528 = vmatprep.subr.mxu0 0.0
    %v529 = vand.u32 %v46, 4294901760
    %v530 = vsub.f32 %v46, %v529
    %v531 = vand.u32 %v530, 4294901760
    %532 = vmatpush1.msra.mxu0 %v531
    %533 = vmatprep.subr.mxu0 0.0
    %v534 = vand.u32 %v47, 4294901760
    %v535 = vsub.f32 %v47, %v534
    %v536 = vand.u32 %v535, 4294901760
    %537 = vmatpush1.msra.mxu0 %v536
    %538 = vmatprep.subr.mxu0 0.0
    %v539 = vand.u32 %v48, 4294901760
    %v540 = vsub.f32 %v48, %v539
    %v541 = vand.u32 %v540, 4294901760
    %542 = vmatpush1.msra.mxu0 %v541
    %543 = vmatprep.subr.mxu0 0.0
    %v544 = vand.u32 %v49, 4294901760
    %v545 = vsub.f32 %v49, %v544
    %v546 = vand.u32 %v545, 4294901760
    %547 = vmatpush1.msra.mxu0 %v546
    %548 = vmatprep.subr.mxu0 0.0
    %v549 = vand.u32 %v50, 4294901760
    %v550 = vsub.f32 %v50, %v549
    %v551 = vand.u32 %v550, 4294901760
    %552 = vmatpush1.msra.mxu0 %v551
    %553 = vmatprep.subr.mxu0 0.0
    %v554 = vand.u32 %v51, 4294901760
    %v555 = vsub.f32 %v51, %v554
    %v556 = vand.u32 %v555, 4294901760
    %557 = vmatpush1.msra.mxu0 %v556
    %558 = vmatprep.subr.mxu0 0.0
    %v559 = vand.u32 %v52, 4294901760
    %v560 = vsub.f32 %v52, %v559
    %v561 = vand.u32 %v560, 4294901760
    %562 = vmatpush1.msra.mxu0 %v561
    %563 = vmatprep.subr.mxu0 0.0
    %v564 = vand.u32 %v53, 4294901760
    %v565 = vsub.f32 %v53, %v564
    %v566 = vand.u32 %v565, 4294901760
    %567 = vmatpush1.msra.mxu0 %v566
    %568 = vmatprep.subr.mxu0 0.0
    %v569 = vand.u32 %v54, 4294901760
    %v570 = vsub.f32 %v54, %v569
    %v571 = vand.u32 %v570, 4294901760
    %572 = vmatpush1.msra.mxu0 %v571
    %573 = vmatprep.subr.mxu0 0.0
    %v574 = vand.u32 %v55, 4294901760
    %v575 = vsub.f32 %v55, %v574
    %v576 = vand.u32 %v575, 4294901760
    %577 = vmatpush1.msra.mxu0 %v576
    %578 = vmatprep.subr.mxu0 0.0
    %v579 = vand.u32 %v56, 4294901760
    %v580 = vsub.f32 %v56, %v579
    %v581 = vand.u32 %v580, 4294901760
    %582 = vmatpush1.msra.mxu0 %v581
    %583 = vmatprep.subr.mxu0 0.0
    %v584 = vand.u32 %v57, 4294901760
    %v585 = vsub.f32 %v57, %v584
    %v586 = vand.u32 %v585, 4294901760
    %587 = vmatpush1.msra.mxu0 %v586
    %588 = vmatprep.subr.mxu0 0.0
    %v589 = vand.u32 %v58, 4294901760
    %v590 = vsub.f32 %v58, %v589
    %v591 = vand.u32 %v590, 4294901760
    %592 = vmatpush1.msra.mxu0 %v591
    %593 = vmatprep.subr.mxu0 0.0
    %v594 = vand.u32 %v59, 4294901760
    %v595 = vsub.f32 %v59, %v594
    %v596 = vand.u32 %v595, 4294901760
    %597 = vmatpush1.msra.mxu0 %v596
    %598 = vmatprep.subr.mxu0 0.0
    %v599 = vand.u32 %v60, 4294901760
    %v600 = vsub.f32 %v60, %v599
    %v601 = vand.u32 %v600, 4294901760
    %602 = vmatpush1.msra.mxu0 %v601
    %603 = vmatprep.subr.mxu0 0.0
    %v604 = vand.u32 %v61, 4294901760
    %v605 = vsub.f32 %v61, %v604
    %v606 = vand.u32 %v605, 4294901760
    %607 = vmatpush1.msra.mxu0 %v606
    %608 = vmatprep.subr.mxu0 0.0
    %609 = vmatpush1.msra.mxu0 0.0
    %610 = vmatprep.subr.mxu0 0.0
    %611 = vmatpush1.msra.mxu0 0.0
    %612 = vmatprep.subr.mxu0 0.0
    %613 = vmatpush1.msra.mxu0 0.0
    %614 = vmatprep.subr.mxu0 0.0
    %615 = vmatpush1.msra.mxu0 0.0
    %616 = vmatprep.subr.mxu0 0.0
    %617 = vmatpush1.msra.mxu0 0.0
    %618 = vmatprep.subr.mxu0 0.0
    %619 = vmatpush1.msra.mxu0 0.0
    %620 = vmatprep.subr.mxu0 0.0
    %621 = vmatpush1.msra.mxu0 0.0
    %622 = vmatprep.subr.mxu0 0.0
    %623 = vmatpush1.msra.mxu0 0.0
    %624 = vmatprep.subr.mxu0 0.0
    %625 = vmatpush1.msra.mxu0 0.0
    %626 = vmatprep.subr.mxu0 0.0
    %627 = vmatpush1.msra.mxu0 0.0
    %628 = vmatprep.subr.mxu0 0.0
    %629 = vmatpush1.msra.mxu0 0.0
    %630 = vmatprep.subr.mxu0 0.0
    %631 = vmatpush1.msra.mxu0 0.0
    %632 = vmatprep.subr.mxu0 0.0
    %633 = vmatpush1.msra.mxu0 0.0
    %634 = vmatprep.subr.mxu0 0.0
    %635 = vmatpush1.msra.mxu0 0.0
    %636 = vmatprep.subr.mxu0 0.0
    %637 = vmatpush1.msra.mxu0 0.0
    %638 = vmatprep.subr.mxu0 0.0
    %639 = vmatpush1.msra.mxu0 0.0
    %640 = vmatprep.mubr.f32.mxu0 0.0
    %v641 = vand.u32 %v42, 4294901760
    %642 = vmatmul.mubr.f32.gmra.mrb[0].mxu0 %v641
    %v643 = vpop.f32.mrb[0].mxu0
    %v644 = vadd.f32 %v517, %v643
    %v645 = vpop.f32.mrb[0].mxu0
    %646 = vmatprep.mubr.f32.mxu0 0.0
    %v647 = vand.u32 %v43, 4294901760
    %648 = vmatmul.mubr.f32.gmra.mrb[0].mxu0 %v647
    %v649 = vpop.f32.mrb[0].mxu0
    %v650 = vadd.f32 %v525, %v649
    %v651 = vpop.f32.mrb[0].mxu0
    %652 = vdwg.mxu0
    %653 = vmatprep.subr.mxu0 0.0
    %v654 = vand.u32 %v46, 4294901760
    %655 = vmatpush1.msra.mxu0 %v654
    %656 = vmatprep.subr.mxu0 0.0
    %v657 = vand.u32 %v47, 4294901760
    %658 = vmatpush1.msra.mxu0 %v657
    %659 = vmatprep.subr.mxu0 0.0
    %v660 = vand.u32 %v48, 4294901760
    %661 = vmatpush1.msra.mxu0 %v660
    %662 = vmatprep.subr.mxu0 0.0
    %v663 = vand.u32 %v49, 4294901760
    %664 = vmatpush1.msra.mxu0 %v663
    %665 = vmatprep.subr.mxu0 0.0
    %v666 = vand.u32 %v50, 4294901760
    %667 = vmatpush1.msra.mxu0 %v666
    %668 = vmatprep.subr.mxu0 0.0
    %v669 = vand.u32 %v51, 4294901760
    %670 = vmatpush1.msra.mxu0 %v669
    %671 = vmatprep.subr.mxu0 0.0
    %v672 = vand.u32 %v52, 4294901760
    %673 = vmatpush1.msra.mxu0 %v672
    %674 = vmatprep.subr.mxu0 0.0
    %v675 = vand.u32 %v53, 4294901760
    %676 = vmatpush1.msra.mxu0 %v675
    %677 = vmatprep.subr.mxu0 0.0
    %v678 = vand.u32 %v54, 4294901760
    %679 = vmatpush1.msra.mxu0 %v678
    %680 = vmatprep.subr.mxu0 0.0
    %v681 = vand.u32 %v55, 4294901760
    %682 = vmatpush1.msra.mxu0 %v681
    %683 = vmatprep.subr.mxu0 0.0
    %v684 = vand.u32 %v56, 4294901760
    %685 = vmatpush1.msra.mxu0 %v684
    %686 = vmatprep.subr.mxu0 0.0
    %v687 = vand.u32 %v57, 4294901760
    %688 = vmatpush1.msra.mxu0 %v687
    %689 = vmatprep.subr.mxu0 0.0
    %v690 = vand.u32 %v58, 4294901760
    %691 = vmatpush1.msra.mxu0 %v690
    %692 = vmatprep.subr.mxu0 0.0
    %v693 = vand.u32 %v59, 4294901760
    %694 = vmatpush1.msra.mxu0 %v693
    %695 = vmatprep.subr.mxu0 0.0
    %v696 = vand.u32 %v60, 4294901760
    %697 = vmatpush1.msra.mxu0 %v696
    %698 = vmatprep.subr.mxu0 0.0
    %v699 = vand.u32 %v61, 4294901760
    %700 = vmatpush1.msra.mxu0 %v699
    %701 = vmatprep.subr.mxu0 0.0
    %702 = vmatpush1.msra.mxu0 0.0
    %703 = vmatprep.subr.mxu0 0.0
    %704 = vmatpush1.msra.mxu0 0.0
    %705 = vmatprep.subr.mxu0 0.0
    %706 = vmatpush1.msra.mxu0 0.0
    %707 = vmatprep.subr.mxu0 0.0
    %708 = vmatpush1.msra.mxu0 0.0
    %709 = vmatprep.subr.mxu0 0.0
    %710 = vmatpush1.msra.mxu0 0.0
    %711 = vmatprep.subr.mxu0 0.0
    %712 = vmatpush1.msra.mxu0 0.0
    %713 = vmatprep.subr.mxu0 0.0
    %714 = vmatpush1.msra.mxu0 0.0
    %715 = vmatprep.subr.mxu0 0.0
    %716 = vmatpush1.msra.mxu0 0.0
    %717 = vmatprep.subr.mxu0 0.0
    %718 = vmatpush1.msra.mxu0 0.0
    %719 = vmatprep.subr.mxu0 0.0
    %720 = vmatpush1.msra.mxu0 0.0
    %721 = vmatprep.subr.mxu0 0.0
    %722 = vmatpush1.msra.mxu0 0.0
    %723 = vmatprep.subr.mxu0 0.0
    %724 = vmatpush1.msra.mxu0 0.0
    %725 = vmatprep.subr.mxu0 0.0
    %726 = vmatpush1.msra.mxu0 0.0
    %727 = vmatprep.subr.mxu0 0.0
    %728 = vmatpush1.msra.mxu0 0.0
    %729 = vmatprep.subr.mxu0 0.0
    %730 = vmatpush1.msra.mxu0 0.0
    %731 = vmatprep.subr.mxu0 0.0
    %732 = vmatpush1.msra.mxu0 0.0
    %733 = vmatprep.mubr.f32.mxu0 0.0
    %v734 = vand.u32 %v42, 4294901760
    %735 = vmatmul.mubr.f32.gmra.mrb[0].mxu0 %v734
    %v736 = vpop.f32.mrb[0].mxu0
    %v737 = vadd.f32 %v644, %v736
    %v738 = vpop.f32.mrb[0].mxu0
    %739 = vmatprep.mubr.f32.mxu0 0.0
    %v740 = vand.u32 %v43, 4294901760
    %741 = vmatmul.mubr.f32.gmra.mrb[0].mxu0 %v740
    %v742 = vpop.f32.mrb[0].mxu0
    %v743 = vadd.f32 %v650, %v742
    %v744 = vpop.f32.mrb[0].mxu0
    %745 = vdwg.mxu0
    %v746 = vadd.f32 %v44, %v737
    %v747 = vadd.f32 %v45, %v743
    %748 = vst [vmem:[#allocation2] sm:$0xff] %v746
    %749 = vst [vmem:[#allocation2 + $0x8] sm:$0xff] %v747
    %v750 = vld [vmem:[#allocation2] sm:$0xff]
    %v751 = vld [vmem:[#allocation2 + $0x8] sm:$0xff]
    %752 = vst [vmem:[#allocation6] sm:$0xff] %v750
    %753 = vst [vmem:[#allocation6 + $0x8] sm:$0xff] %v751
    // Predicated region
    $region14: #{tpu_custom_call.1} parent=1 // pred_check
      _
    $region15: #{tpu_custom_call.1} parent=1 // pred_check_branch
      %755 = sbr.rel (0) target = $region17
    $region16: #{tpu_custom_call.1} parent=1 // pred_region
      %s757 = ssub.s32 256, 256
      %758 = vsyncadd [#allocation5], %s757
      %s759 = sshll.u32 [#allocation6], 4
      %s760 = int_to_ptr.vmem [resolvable:$true] %s759
      %765 = dma.vmem_to_hbm [thread:$0]  %s760, 256, %s2, [#allocation5], 128, 128, 8
    $region17: #{tpu_custom_call.1} parent=1 // pred_fallthru
      _
    // Predicated region
    $region18: #{tpu_custom_call.1} parent=1 // pred_check
      _
    $region19: #{tpu_custom_call.1} parent=1 // pred_check_branch
      %767 = sbr.rel (0) target = $region21
    $region20: #{tpu_custom_call.1} parent=1 // pred_region
      %768 = dma.done [#allocation5], 256
    $region21: #{tpu_custom_call.1} parent=1 // pred_fallthru
      _
    %769 = vsyncpa [#allocation4], 1
    %770 = vsyncpa [#allocation5], 1

</llo_original>
